<compile_context>
chip_gen: v7x
topology: tpu7x:2x2x1
jax: 0.10.0
libtpu: 0.0.40
codegen_flags: <defaults>
</compile_context>

<pallas_src>
import functools
import math

import jax
import jax.numpy as jnp
from jax.experimental import pallas as pl
from jax.experimental.pallas import tpu as pltpu


_TILE_THRESHOLD_BYTES = 4 * 1024 * 1024   # below this: single block, no grid
_VMEM_BUDGET_BYTES = 24 * 1024 * 1024     # double-buffered working-set budget
_VMEM_LIMIT_BYTES = 32 * 1024 * 1024      # scoped VMEM limit (safe on v5e/v6e/v7x)


def _concat_kernel(*refs, col_sizes, out_dtype):
    """Scale each input block by (i+1) and place it into the output slab."""
    in_refs = refs[:-1]
    out_ref = refs[-1]
    off = 0
    for i, r in enumerate(in_refs):
        sz = col_sizes[i]
        scale = jnp.asarray(i + 1, out_dtype)
        # Static slice along the (lane-dense) last dim of the output block;
        # exactly one full-tile store per input, no read-modify-write.
        out_ref[:, off:off + sz] = r[...] * scale
        off += sz


def weighted_concat(tensors, dim):
    """Pallas equivalent of WeightedConcatLayer(dim)(*tensors)."""
    tensors = list(tensors)
    assert len(tensors) >= 1
    ndim = tensors[0].ndim
    axis = dim % ndim

    # torch.cat contract: all non-concat dims must match.
    base = tensors[0].shape
    for t in tensors:
        assert t.ndim == ndim
        for a in range(ndim):
            if a != axis:
                assert t.shape[a] == base[a]

    # Mixed-dtype promotion (like torch.cat); scales are exact for fp dtypes.
    out_dtype = jnp.result_type(*tensors)
    tensors = [t.astype(out_dtype) for t in tensors]

    # ---- lane-dense 2-D view --------------------------------------------
    # rows   = prod(shape[:axis])                  (shared by all inputs)
    # cols_i = shape[axis] * prod(shape[axis+1:])  (per input)
    # Concatenating along `axis` equals concatenating these 2-D views along
    # their last dim, because every trailing dim matches across inputs.
    lead = base[:axis]
    trail = base[axis + 1:]
    rows = math.prod(lead) if lead else 1
    trail_sz = math.prod(trail) if trail else 1
    col_sizes = [t.shape[axis] * trail_sz for t in tensors]
    total_cols = sum(col_sizes)

    flat_ins = [t.reshape(rows, c) for t, c in zip(tensors, col_sizes)]

    out_full_shape = list(base)
    out_full_shape[axis] = sum(t.shape[axis] for t in tensors)
    out_full_shape = tuple(out_full_shape)

    kernel = functools.partial(
        _concat_kernel, col_sizes=tuple(col_sizes), out_dtype=out_dtype)

    itemsize = jnp.dtype(out_dtype).itemsize
    traffic_bytes = 2 * rows * total_cols * itemsize  # read + write

    if traffic_bytes <= _TILE_THRESHOLD_BYTES or rows < 16:
        # Tiny (or un-tileable) case: one whole-array block, zero grid
        # overhead. Still benefits from the lane-dense output slab.
        out2d = pl.pallas_call(
            kernel,
            out_shape=jax.ShapeDtypeStruct((rows, total_cols), out_dtype),
            in_specs=[pl.BlockSpec(memory_space=pltpu.MemorySpace.VMEM)]
            * len(flat_ins),
            out_specs=pl.BlockSpec(memory_space=pltpu.MemorySpace.VMEM),
        )(*flat_ins)
    else:
        # Row-tiled, auto double-buffered pipeline (mem-bound kernel).
        # Per-row VMEM: all input tiles (sum = total_cols) + output tile.
        row_bytes = 2 * total_cols * itemsize
        tile_rows = _VMEM_BUDGET_BYTES // (2 * row_bytes)  # x2: double-buffer
        tile_rows = max(8, min(rows, (tile_rows // 8) * 8))
        grid = (pl.cdiv(rows, tile_rows),)

        in_specs = [
            pl.BlockSpec((tile_rows, c), lambda r: (r, 0)) for c in col_sizes
        ]
        out_spec = pl.BlockSpec((tile_rows, total_cols), lambda r: (r, 0))

        out2d = pl.pallas_call(
            kernel,
            out_shape=jax.ShapeDtypeStruct((rows, total_cols), out_dtype),
            grid=grid,
            in_specs=in_specs,
            out_specs=out_spec,
            compiler_params=pltpu.CompilerParams(
                dimension_semantics=("parallel",),
                vmem_limit_bytes=_VMEM_LIMIT_BYTES,
            ),
        )(*flat_ins)

    return out2d.reshape(out_full_shape)


if __name__ == "__main__":
    key = jax.random.PRNGKey(0)
    k1, k2, k3 = jax.random.split(key, 3)

    # --- small NCHW case (matches the test module): concat along channels ---
    x1 = jax.random.normal(k1, (2, 4, 16, 16), dtype=jnp.float32)
    x2 = jax.random.normal(k2, (2, 4, 16, 16), dtype=jnp.float32)
    x3 = jax.random.normal(k3, (2, 4, 16, 16), dtype=jnp.float32)

    dim = 1
    out = weighted_concat([x1, x2, x3], dim=dim)
    out = jax.block_until_ready(out)

    ref = jnp.concatenate([x1 * 1.0, x2 * 2.0, x3 * 3.0], axis=dim)
    assert out.shape == (2, 12, 16, 16), out.shape
    assert out.dtype == jnp.float32
    assert jnp.allclose(out, ref, atol=1e-6, rtol=1e-6)

    # --- larger case to exercise the tiled / double-buffered path ----------
    k4, k5 = jax.random.split(k3, 2)
    y1 = jax.random.normal(k4, (256, 8, 32, 32), dtype=jnp.float32)
    y2 = jax.random.normal(k5, (256, 8, 32, 32), dtype=jnp.float32)
    out_big = weighted_concat([y1, y2], dim=1)
    out_big = jax.block_until_ready(out_big)
    ref_big = jnp.concatenate([y1 * 1.0, y2 * 2.0], axis=1)
    assert out_big.shape == (256, 16, 32, 32), out_big.shape
    assert jnp.allclose(out_big, ref_big, atol=1e-6, rtol=1e-6)

    print("KERNEL_OK")
</pallas_src>

<mosaic_0001>
module attributes {stable_mosaic.version = 11 : i64} {
  func.func @_concat_kernel(%arg0: memref<2x1024xf32, #tpu.memory_space<vmem>>, %arg1: memref<2x1024xf32, #tpu.memory_space<vmem>>, %arg2: memref<2x1024xf32, #tpu.memory_space<vmem>>, %arg3: memref<2x3072xf32, #tpu.memory_space<vmem>>) attributes {dimension_semantics = [], scalar_prefetch = 0 : i64, scratch_operands = 0 : i64, tpu.core_type = #tpu.core_type<tc>} {
    %c0 = arith.constant 0 : index
    %c0_0 = arith.constant 0 : index
    %0 = vector.load %arg0[%c0, %c0_0] : memref<2x1024xf32, #tpu.memory_space<vmem>>, vector<2x1024xf32>
    %cst = arith.constant 1.000000e+00 : f32
    %1 = vector.broadcast %cst : f32 to vector<2x1024xf32>
    %2 = arith.mulf %0, %1 : vector<2x1024xf32>
    %c0_1 = arith.constant 0 : index
    %c0_2 = arith.constant 0 : index
    %3 = vector.load %arg3[%c0_1, %c0_2] : memref<2x3072xf32, #tpu.memory_space<vmem>>, vector<2x1024xf32>
    tpu.vector_store %arg3[%c0_1, %c0_2], %2 {strides = array<i32>} : memref<2x3072xf32, #tpu.memory_space<vmem>>, vector<2x1024xf32>,
    %c0_3 = arith.constant 0 : index
    %c0_4 = arith.constant 0 : index
    %4 = vector.load %arg1[%c0_3, %c0_4] : memref<2x1024xf32, #tpu.memory_space<vmem>>, vector<2x1024xf32>
    %cst_5 = arith.constant 2.000000e+00 : f32
    %5 = vector.broadcast %cst_5 : f32 to vector<2x1024xf32>
    %6 = arith.mulf %4, %5 : vector<2x1024xf32>
    %c0_6 = arith.constant 0 : index
    %c1024 = arith.constant 1024 : index
    %7 = vector.load %arg3[%c0_6, %c1024] : memref<2x3072xf32, #tpu.memory_space<vmem>>, vector<2x1024xf32>
    tpu.vector_store %arg3[%c0_6, %c1024], %6 {strides = array<i32>} : memref<2x3072xf32, #tpu.memory_space<vmem>>, vector<2x1024xf32>,
    %c0_7 = arith.constant 0 : index
    %c0_8 = arith.constant 0 : index
    %8 = vector.load %arg2[%c0_7, %c0_8] : memref<2x1024xf32, #tpu.memory_space<vmem>>, vector<2x1024xf32>
    %cst_9 = arith.constant 3.000000e+00 : f32
    %9 = vector.broadcast %cst_9 : f32 to vector<2x1024xf32>
    %10 = arith.mulf %8, %9 : vector<2x1024xf32>
    %c0_10 = arith.constant 0 : index
    %c2048 = arith.constant 2048 : index
    %11 = vector.load %arg3[%c0_10, %c2048] : memref<2x3072xf32, #tpu.memory_space<vmem>>, vector<2x1024xf32>
    tpu.vector_store %arg3[%c0_10, %c2048], %10 {strides = array<i32>} : memref<2x3072xf32, #tpu.memory_space<vmem>>, vector<2x1024xf32>,
    return
  }
}

</mosaic_0001>

<llo_original>
// kernel: tpu_custom_call.1
$region0: #{tpu_custom_call.1}
  #allocation0 [shape = 'u32[]', space=smem, size = 0x4, offset = 0x4, fixed_abs, tag = 'smem constant byte address 0x4 - core index']
  #allocation1 [shape = 'u32[144,128]{1,0:T(1,128)}', space=vmem, size = 0x12000, scoped, tag = 'internal scratch']
  %s0 = inlined_call_operand.hbm [shape: f32[2,1024], index: 0, kind: input, shape index: {}]
  %s1 = inlined_call_operand.hbm [shape: f32[2,1024], index: 1, kind: input, shape index: {}]
  %s2 = inlined_call_operand.hbm [shape: f32[2,1024], index: 2, kind: input, shape index: {}]
  %s3 = inlined_call_operand.hbm [shape: f32[2,3072], index: 3, kind: output, shape index: {}]
  %s4 = sld [smem:[#allocation0]]
  $region34: #{tpu_custom_call.1} parent=0
    _
  %s6 = ssub.s32 1, %s4
  %s7 = scalar_select 0, %s6, %s4
  $region1: #{tpu_custom_call.1} parent=0
    #allocation2 [shape = 'u8[8192]{0}', space=vmem, size = 0x2000, scoped, tag = 'input window, operand 0, single buffered']
    #allocation3 [shape = 's32[1]{0}', space=sflag, size = 0x4, scoped, tag = 'scoped memory for tpu_custom_call.1']
    #allocation4 [shape = 's32[1]{0}', space=sflag, size = 0x4, scoped, tag = 'scoped memory for tpu_custom_call.1']
    #allocation5 [shape = 'u8[8192]{0}', space=vmem, size = 0x2000, scoped, tag = 'input window, operand 1, single buffered']
    #allocation6 [shape = 's32[1]{0}', space=sflag, size = 0x4, scoped, tag = 'scoped memory for tpu_custom_call.1']
    #allocation7 [shape = 'u8[8192]{0}', space=vmem, size = 0x2000, scoped, tag = 'input window, operand 2, single buffered']
    #allocation8 [shape = 'u8[24576]{0}', space=vmem, size = 0x6000, scoped, tag = 'output window, operand 0, single buffered']
    %8 = vsyncpa [#allocation3], 0
    %9 = vsyncpa [#allocation6], 0
    %10 = vsyncpa [#allocation4], 0
    // Predicated region
    $region2: #{tpu_custom_call.1} parent=1 // pred_check
      _
    $region3: #{tpu_custom_call.1} parent=1 // pred_check_branch
      %12 = sbr.rel (0) target = $region5
    $region4: #{tpu_custom_call.1} parent=1 // pred_region
      %s14 = ssub.s32 256, 256
      %15 = vsyncadd [#allocation3], %s14
      %s17 = sshll.u32 [#allocation2], 4
      %s18 = int_to_ptr.vmem [resolvable:$true] %s17
      %20 = dma.hbm_to_vmem [thread:$0]  %s0, 256, %s18, [#allocation3]
    $region5: #{tpu_custom_call.1} parent=1 // pred_fallthru
      _
    // Predicated region
    $region6: #{tpu_custom_call.1} parent=1 // pred_check
      _
    $region7: #{tpu_custom_call.1} parent=1 // pred_check_branch
      %22 = sbr.rel (0) target = $region9
    $region8: #{tpu_custom_call.1} parent=1 // pred_region
      %s24 = ssub.s32 256, 256
      %25 = vsyncadd [#allocation6], %s24
      %s27 = sshll.u32 [#allocation5], 4
      %s28 = int_to_ptr.vmem [resolvable:$true] %s27
      %30 = dma.hbm_to_vmem [thread:$0]  %s1, 256, %s28, [#allocation6]
    $region9: #{tpu_custom_call.1} parent=1 // pred_fallthru
      _
    // Predicated region
    $region10: #{tpu_custom_call.1} parent=1 // pred_check
      _
    $region11: #{tpu_custom_call.1} parent=1 // pred_check_branch
      %32 = sbr.rel (0) target = $region13
    $region12: #{tpu_custom_call.1} parent=1 // pred_region
      %s34 = ssub.s32 256, 256
      %35 = vsyncadd [#allocation6], %s34
      %s37 = sshll.u32 [#allocation7], 4
      %s38 = int_to_ptr.vmem [resolvable:$true] %s37
      %40 = dma.hbm_to_vmem [thread:$0]  %s2, 256, %s38, [#allocation6]
    $region13: #{tpu_custom_call.1} parent=1 // pred_fallthru
      _
    // Predicated region
    $region14: #{tpu_custom_call.1} parent=1 // pred_check
      _
    $region15: #{tpu_custom_call.1} parent=1 // pred_check_branch
      %42 = sbr.rel (0) target = $region17
    $region16: #{tpu_custom_call.1} parent=1 // pred_region
      %43 = dma.done [#allocation3], 256
    $region17: #{tpu_custom_call.1} parent=1 // pred_fallthru
      _
    // Predicated region
    $region18: #{tpu_custom_call.1} parent=1 // pred_check
      _
    $region19: #{tpu_custom_call.1} parent=1 // pred_check_branch
      %45 = sbr.rel (0) target = $region21
    $region20: #{tpu_custom_call.1} parent=1 // pred_region
      %46 = dma.done [#allocation6], 256
    $region21: #{tpu_custom_call.1} parent=1 // pred_fallthru
      _
    // Predicated region
    $region22: #{tpu_custom_call.1} parent=1 // pred_check
      _
    $region23: #{tpu_custom_call.1} parent=1 // pred_check_branch
      %48 = sbr.rel (0) target = $region25
    $region24: #{tpu_custom_call.1} parent=1 // pred_region
      %49 = dma.done [#allocation6], 256
    $region25: #{tpu_custom_call.1} parent=1 // pred_fallthru
      _
    %v50 = vld [vmem:[#allocation2] sm:$0xff]
    %v51 = vld [vmem:[#allocation2 + $0x8] sm:$0xff]
    %52 = vst [vmem:[#allocation8] sm:$0xff] %v50
    %53 = vst [vmem:[#allocation8 + $0x8] sm:$0xff] %v51
    %v54 = vld [vmem:[#allocation5] sm:$0xff]
    %v55 = vld [vmem:[#allocation5 + $0x8] sm:$0xff]
    %v56 = vmul.f32 %v54, 2.0
    %v57 = vmul.f32 %v55, 2.0
    %58 = vst [vmem:[#allocation8 + $0x10] sm:$0xff] %v56
    %59 = vst [vmem:[#allocation8 + $0x18] sm:$0xff] %v57
    %v60 = vld [vmem:[#allocation7] sm:$0xff]
    %v61 = vld [vmem:[#allocation7 + $0x8] sm:$0xff]
    %v62 = vmul.f32 %v60, 3.0
    %v63 = vmul.f32 %v61, 3.0
    %64 = vst [vmem:[#allocation8 + $0x20] sm:$0xff] %v62
    %65 = vst [vmem:[#allocation8 + $0x28] sm:$0xff] %v63
    // Predicated region
    $region26: #{tpu_custom_call.1} parent=1 // pred_check
      _
    $region27: #{tpu_custom_call.1} parent=1 // pred_check_branch
      %67 = sbr.rel (0) target = $region29
    $region28: #{tpu_custom_call.1} parent=1 // pred_region
      %s69 = ssub.s32 768, 768
      %70 = vsyncadd [#allocation4], %s69
      %s72 = sshll.u32 [#allocation8], 4
      %s73 = int_to_ptr.vmem [resolvable:$true] %s72
      %75 = dma.vmem_to_hbm [thread:$0]  %s73, 768, %s3, [#allocation4]
    $region29: #{tpu_custom_call.1} parent=1 // pred_fallthru
      _
    // Predicated region
    $region30: #{tpu_custom_call.1} parent=1 // pred_check
      _
    $region31: #{tpu_custom_call.1} parent=1 // pred_check_branch
      %77 = sbr.rel (0) target = $region33
    $region32: #{tpu_custom_call.1} parent=1 // pred_region
      %78 = dma.done [#allocation4], 768
    $region33: #{tpu_custom_call.1} parent=1 // pred_fallthru
      _
    %79 = vsyncpa [#allocation3], 1
    %80 = vsyncpa [#allocation6], 1
    %81 = vsyncpa [#allocation4], 1

</llo_original>
